<compile_context>
chip_gen: v6e
topology: v6e:2x2x1
jax: 0.10.0
libtpu: 0.0.40
codegen_flags: <defaults>
</compile_context>

<pallas_src>
import functools
import math

import jax
import jax.numpy as jnp
from jax.experimental import pallas as pl
from jax.experimental.pallas import tpu as pltpu


def _round_up(x: int, m: int) -> int:
    return (x + m - 1) // m * m


def _tpu_defaults():
    """Generation-aware VMEM capacity and TensorCore count, with safe fallbacks."""
    vmem_bytes = 128 * 1024 * 1024
    num_cores = 1
    try:
        info = pltpu.get_tpu_info()
        vmem_bytes = int(getattr(info, "vmem_capacity_bytes", vmem_bytes)
                         or vmem_bytes)
        for attr in ("num_cores", "tensorcores_per_chip", "num_tensorcores",
                     "cores_per_chip"):
            v = getattr(info, attr, None)
            if v:
                num_cores = int(v)
                break
    except Exception:
        pass
    return vmem_bytes, num_cores


def _tversky_sums_kernel(pred_ref, label_ref, sp_ref, sl_ref, spl_ref, *,
                         smoothing, smooth_in_kernel, n_valid, tile_n, slab,
                         tiles_per_part, needs_mask_path, unroll):
    """Accumulate per-row sum(p), sum(label'), sum(p*label') as (R, slab) sums."""
    part = pl.program_id(0)
    j = pl.program_id(1)
    R, tn = pred_ref.shape
    n_slabs = tn // slab

    @pl.when(j == 0)
    def _():
        sp_ref[...] = jnp.zeros_like(sp_ref)
        sl_ref[...] = jnp.zeros_like(sl_ref)
        spl_ref[...] = jnp.zeros_like(spl_ref)

    # Global (unclamped) tile index along the flattened spatial axis.
    jj = part * tiles_per_part + j
    rem0 = n_valid - jj * tile_n  # number of in-bounds columns in this tile

    def accumulate(apply_mask: bool):
        # Hoisted iota: only materialized on masked (tail/overflow) tiles.
        lane = (jax.lax.broadcasted_iota(jnp.int32, (R, slab), 1)
                if apply_mask else None)

        def body(t, carry):
            sp, sls, spl = carry
            off = pl.multiple_of(t * slab, slab)
            p = pred_ref[:, pl.ds(off, slab)].astype(jnp.float32)
            l = label_ref[:, pl.ds(off, slab)].astype(jnp.float32)
            if smooth_in_kernel:
                # Sequential masked-assign semantics, matching the PyTorch ref.
                l = jnp.where(l == 0.0, jnp.float32(smoothing), l)
                l = jnp.where(l == 1.0, jnp.float32(1.0 - smoothing), l)
            if apply_mask:
                valid = lane < (rem0 - off)  # scalar threshold vs hoisted iota
                p = jnp.where(valid, p, 0.0)
                l = jnp.where(valid, l, 0.0)
            return (sp + p, sls + l, spl + p * l)

        zeros = jnp.zeros((R, slab), jnp.float32)
        sp, sls, spl = jax.lax.fori_loop(0, n_slabs, body,
                                         (zeros, zeros, zeros), unroll=unroll)
        sp_ref[...] = sp_ref[...] + sp[None]
        sl_ref[...] = sl_ref[...] + sls[None]
        spl_ref[...] = spl_ref[...] + spl[None]

    if needs_mask_path:
        tail = (jj + 1) * tile_n > n_valid  # ragged last tile or overflow step

        @pl.when(jnp.logical_not(tail))
        def _():
            accumulate(False)

        @pl.when(tail)
        def _():
            accumulate(True)
    else:
        accumulate(False)


def tversky_loss(pred, label, *, alpha=0.5, beta=0.5, epsilon=1e-6,
                 smoothing=0.0, include_background=False, mask=None,
                 reduce_channels=False, reduction="mean", weights=None,
                 binary_labels=False, tile_n=None, num_parts=None,
                 vmem_input_budget_bytes=None):
    """Pallas-backed TverskyLoss.forward (log_fn path omitted)."""
    if pred.shape != label.shape:
        raise ValueError(
            f"Expected pred shape ({pred.shape}) to equal label shape "
            f"({label.shape}).")
    B, C = pred.shape[:2]
    N = 1
    for s in pred.shape[2:]:
        N *= int(s)
    N = max(N, 1)
    R = B * C

    p_item = jnp.dtype(pred.dtype).itemsize
    l_item = jnp.dtype(label.dtype).itemsize

    # --- sublane folding: keep vregs fully occupied when B*C is tiny ---------
    sub = max(8, 32 // max(1, min(p_item, l_item)))  # 8 f32, 16 bf16, 32 int8
    G = 1
    if R < sub and N > 1:
        need = sub // math.gcd(R, sub)  # minimal fold so (R*G) % sub == 0
        for k in range(1, 17):
            g = k * need
            if N % g == 0:
                G = g
                break
    R_eff, N_eff = R * G, N // G

    # Pure views, no HBM pass, no up-cast.
    pred2 = jnp.reshape(pred, (R_eff, N_eff))
    label2 = jnp.reshape(label, (R_eff, N_eff))

    # --- generation-aware budgets --------------------------------------------
    vmem_cap, num_cores = _tpu_defaults()
    if num_parts is None:
        num_parts = num_cores  # parallel split only pays off with >1 TensorCore
    if vmem_input_budget_bytes is None:
        vmem_input_budget_bytes = max(4 << 20, int(0.25 * vmem_cap))
    vmem_input_budget_bytes = min(int(vmem_input_budget_bytes),
                                  int(0.4 * vmem_cap))

    # Accumulator slab width: wide enough for 2-4 independent add chains,
    # narrow enough that the three (R, slab) sums stay register-resident.
    if R_eff <= 16:
        slab = 512
    elif R_eff <= 32:
        slab = 256
    else:
        slab = 128
    # TODO(synk): add a row-tiling grid axis for R_eff >~ 96 so accumulators
    # stay register-resident for very large B*C.

    bytes_per_col = 2 * R_eff * (p_item + l_item)  # x2: double-buffered inputs
    max_cols = max(
        slab,
        (vmem_input_budget_bytes // max(bytes_per_col, 1)) // slab * slab)
    if tile_n is None:
        tile_n = max_cols
    tile_n = min(int(tile_n), max_cols, _round_up(N_eff, slab))
    tile_n = max(slab, (tile_n // slab) * slab)

    total_tiles = -(-N_eff // tile_n)
    P = max(1, min(int(num_parts), total_tiles))
    tiles_per_part = -(-total_tiles // P)
    needs_mask_path = (N_eff % tile_n != 0) or (total_tiles % P != 0)

    smooth_in_kernel = (float(smoothing) != 0.0) and (not binary_labels)
    n_slabs = tile_n // slab
    kernel = functools.partial(
        _tversky_sums_kernel,
        smoothing=float(smoothing), smooth_in_kernel=bool(smooth_in_kernel),
        n_valid=int(N_eff), tile_n=int(tile_n), slab=int(slab),
        tiles_per_part=int(tiles_per_part),
        needs_mask_path=bool(needs_mask_path),
        unroll=int(min(4, max(1, n_slabs))))

    def in_index_map(p_idx, j_idx):
        jj = p_idx * tiles_per_part + j_idx
        # Overflow steps (ragged part split) get clamped to the last real block;
        # the kernel masks their contribution to exactly zero.
        return (0, jnp.minimum(jj, total_tiles - 1))

    out_sds = jax.ShapeDtypeStruct((P, R_eff, slab), jnp.float32)
    out_spec = pl.BlockSpec((1, R_eff, slab), lambda p_idx, j_idx: (p_idx, 0, 0))

    in_footprint = 2 * R_eff * tile_n * (p_item + l_item)
    out_footprint = 3 * 2 * R_eff * slab * 4
    vmem_limit = max(32 << 20, in_footprint + out_footprint + (8 << 20))
    vmem_limit = min(vmem_limit, int(0.8 * vmem_cap), 128 << 20)

    sp, sl, spl = pl.pallas_call(
        kernel,
        out_shape=(out_sds, out_sds, out_sds),
        grid_spec=pltpu.PrefetchScalarGridSpec(
            num_scalar_prefetch=0,
            grid=(P, tiles_per_part),
            in_specs=[
                pl.BlockSpec((R_eff, tile_n), in_index_map),
                pl.BlockSpec((R_eff, tile_n), in_index_map),
            ],
            out_specs=[out_spec, out_spec, out_spec],
        ),
        compiler_params=pltpu.CompilerParams(
            dimension_semantics=("parallel", "arbitrary"),
            vmem_limit_bytes=int(vmem_limit)),
    )(pred2, label2)

    # Tiny epilogue: fold parts + lanes (+ sublane-fold groups), then the
    # algebraic TP/FP/FN and the reference's reduction ordering.
    S_p = jnp.sum(sp, axis=(0, 2))
    S_l = jnp.sum(sl, axis=(0, 2))
    S_pl = jnp.sum(spl, axis=(0, 2))
    if G > 1:
        S_p = jnp.sum(S_p.reshape(R, G), axis=1)
        S_l = jnp.sum(S_l.reshape(R, G), axis=1)
        S_pl = jnp.sum(S_pl.reshape(R, G), axis=1)
    S_p = S_p.reshape(B, C)
    S_l = S_l.reshape(B, C)
    S_pl = S_pl.reshape(B, C)

    s = float(smoothing)
    if binary_labels and s != 0.0:
        # For binary labels, label' = s + (1 - 2s) * label, applied algebraically
        # here instead of per-element in the kernel (keeps v7x HBM-bound).
        S_sl = (1.0 - 2.0 * s) * S_l + s * float(N)
        S_psl = (1.0 - 2.0 * s) * S_pl + s * S_p
    else:
        S_sl, S_psl = S_l, S_pl

    TP = S_psl
    FP = alpha * (S_p - S_psl)
    FN = beta * (S_sl - S_psl)

    tversky = (TP + epsilon) / (TP + FP + FN + epsilon)
    if mask is not None:
        tversky = mask * tversky
    if weights is not None:
        tversky = weights * tversky
    if not include_background:
        tversky = tversky[:, 1:]
    dims = (0, 1) if reduce_channels else 0
    if reduction == "mean":
        tversky = jnp.mean(tversky, axis=dims)
    elif reduction == "sum":
        tversky = jnp.sum(tversky, axis=dims)
    return 1.0 - tversky


def _tversky_loss_ref(pred, label, *, alpha=0.5, beta=0.5, epsilon=1e-6,
                      smoothing=0.0, include_background=False, mask=None,
                      reduce_channels=False, reduction="mean", weights=None):
    B, C = pred.shape[:2]
    p = jnp.reshape(pred, (B, C, -1)).astype(jnp.float32)
    l = jnp.reshape(label, (B, C, -1)).astype(jnp.float32)
    sl = jnp.where(l == 0.0, smoothing, l)
    sl = jnp.where(sl == 1.0, 1.0 - smoothing, sl)
    TP = jnp.sum(p * sl, axis=2)
    FP = jnp.sum(alpha * p * (1.0 - sl), axis=2)
    FN = jnp.sum(beta * (1.0 - p) * sl, axis=2)
    tversky = (TP + epsilon) / (TP + FP + FN + epsilon)
    if mask is not None:
        tversky = mask * tversky
    if weights is not None:
        tversky = weights * tversky
    if not include_background:
        tversky = tversky[:, 1:]
    dims = (0, 1) if reduce_channels else 0
    if reduction == "mean":
        tversky = jnp.mean(tversky, axis=dims)
    elif reduction == "sum":
        tversky = jnp.sum(tversky, axis=dims)
    return 1.0 - tversky


if __name__ == "__main__":
    key = jax.random.PRNGKey(0)
    k1, k2, k3, k4, k5, k6 = jax.random.split(key, 6)

    # Test 1: aligned shapes, smoothing = 0 (fast path, single tile, no mask).
    B, C, X, Y, Z = 2, 4, 8, 8, 8
    pred = jax.nn.softmax(
        jax.random.normal(k1, (B, C, X, Y, Z), dtype=jnp.float32), axis=1)
    label = (jax.random.uniform(k2, (B, C, X, Y, Z)) > 0.5).astype(jnp.float32)
    loss = jax.block_until_ready(tversky_loss(pred, label))
    ref = _tversky_loss_ref(pred, label)
    assert loss.shape == (C - 1,)
    assert jnp.allclose(loss, ref, atol=1e-5, rtol=1e-5)

    # Test 2: ragged spatial size + in-kernel smoothing + 2 parallel parts
    # (exercises masked tail tile and clamped overflow step).
    B2, C2 = 2, 3
    shp = (B2, C2, 5, 7, 37)
    pred_b = jax.nn.softmax(
        jax.random.normal(k3, shp, dtype=jnp.float32), axis=1)
    label_b = (jax.random.uniform(k4, shp) > 0.5).astype(jnp.float32)
    loss_b = jax.block_until_ready(
        tversky_loss(pred_b, label_b, alpha=0.3, beta=0.7, smoothing=0.1,
                     tile_n=512, num_parts=2))
    ref_b = _tversky_loss_ref(pred_b, label_b, alpha=0.3, beta=0.7,
                              smoothing=0.1)
    assert loss_b.shape == (C2 - 1,)
    assert jnp.allclose(loss_b, ref_b, atol=1e-5, rtol=1e-5)

    # Test 3: B*C < 8 triggers sublane folding; binary_labels moves smoothing
    # to the epilogue; mask/weights ordering checked against the reference.
    B3, C3 = 1, 2
    shp3 = (B3, C3, 4, 8, 8)
    pred_c = jax.nn.softmax(
        jax.random.normal(k5, shp3, dtype=jnp.float32), axis=1)
    label_c = (jax.random.uniform(k6, shp3) > 0.5).astype(jnp.float32)
    w = jnp.array([[0.25, 2.0]], dtype=jnp.float32)
    m = jnp.array([[1.0, 1.0]], dtype=jnp.float32)
    loss_c = jax.block_until_ready(
        tversky_loss(pred_c, label_c, alpha=0.4, beta=0.6, smoothing=0.2,
                     binary_labels=True, mask=m, weights=w))
    ref_c = _tversky_loss_ref(pred_c, label_c, alpha=0.4, beta=0.6,
                              smoothing=0.2, mask=m, weights=w)
    assert loss_c.shape == (C3 - 1,)
    assert jnp.allclose(loss_c, ref_c, atol=1e-5, rtol=1e-5)

    print("KERNEL_OK")
</pallas_src>

<mosaic_0001>
module attributes {stable_mosaic.version = 11 : i64} {
  func.func @_tversky_sums_kernel(%arg0: i32, %arg1: i32, %arg2: memref<8x512xf32, #tpu.memory_space<vmem>>, %arg3: memref<8x512xf32, #tpu.memory_space<vmem>>, %arg4: memref<1x8x512xf32, #tpu.memory_space<vmem>>, %arg5: memref<1x8x512xf32, #tpu.memory_space<vmem>>, %arg6: memref<1x8x512xf32, #tpu.memory_space<vmem>>) attributes {dimension_semantics = [#tpu.dimension_semantics<parallel>, #tpu.dimension_semantics<arbitrary>], iteration_bounds = array<i64: 1, 1>, scalar_prefetch = 0 : i64, scratch_operands = 0 : i64, tpu.core_type = #tpu.core_type<tc>, window_params = [{transform_indices = @transform_0, window_bounds = array<i64: 8, 512>}, {transform_indices = @transform_1, window_bounds = array<i64: 8, 512>}, {transform_indices = @transform_2, window_bounds = array<i64: 1, 8, 512>}, {transform_indices = @transform_3, window_bounds = array<i64: 1, 8, 512>}, {transform_indices = @transform_4, window_bounds = array<i64: 1, 8, 512>}]} {
    %c0_i32 = arith.constant 0 : i32
    %0 = arith.cmpi eq, %arg1, %c0_i32 : i32
    %1 = arith.extui %0 : i1 to i32
    %c0_i32_0 = arith.constant 0 : i32
    %2 = arith.cmpi ne, %1, %c0_i32_0 : i32
    scf.if %2 {
      %cst_21 = arith.constant 0.000000e+00 : f32
      %26 = vector.broadcast %cst_21 : f32 to vector<1x8x512xf32>
      %c0_22 = arith.constant 0 : index
      %c0_23 = arith.constant 0 : index
      %c0_24 = arith.constant 0 : index
      %27 = vector.load %arg4[%c0_22, %c0_23, %c0_24] : memref<1x8x512xf32, #tpu.memory_space<vmem>>, vector<1x8x512xf32>
      tpu.vector_store %arg4[%c0_22, %c0_23, %c0_24], %26 {strides = array<i32>} : memref<1x8x512xf32, #tpu.memory_space<vmem>>, vector<1x8x512xf32>,
      %cst_25 = arith.constant 0.000000e+00 : f32
      %28 = vector.broadcast %cst_25 : f32 to vector<1x8x512xf32>
      %c0_26 = arith.constant 0 : index
      %c0_27 = arith.constant 0 : index
      %c0_28 = arith.constant 0 : index
      %29 = vector.load %arg5[%c0_26, %c0_27, %c0_28] : memref<1x8x512xf32, #tpu.memory_space<vmem>>, vector<1x8x512xf32>
      tpu.vector_store %arg5[%c0_26, %c0_27, %c0_28], %28 {strides = array<i32>} : memref<1x8x512xf32, #tpu.memory_space<vmem>>, vector<1x8x512xf32>,
      %cst_29 = arith.constant 0.000000e+00 : f32
      %30 = vector.broadcast %cst_29 : f32 to vector<1x8x512xf32>
      %c0_30 = arith.constant 0 : index
      %c0_31 = arith.constant 0 : index
      %c0_32 = arith.constant 0 : index
      %31 = vector.load %arg6[%c0_30, %c0_31, %c0_32] : memref<1x8x512xf32, #tpu.memory_space<vmem>>, vector<1x8x512xf32>
      tpu.vector_store %arg6[%c0_30, %c0_31, %c0_32], %30 {strides = array<i32>} : memref<1x8x512xf32, #tpu.memory_space<vmem>>, vector<1x8x512xf32>,
    } else {
    }
    %cst = arith.constant 0.000000e+00 : f32
    %3 = vector.broadcast %cst : f32 to vector<8x512xf32>
    %c0_i32_1 = arith.constant 0 : i32
    %c512_i32 = arith.constant 512 : i32
    %4 = arith.muli %c0_i32_1, %c512_i32 : i32
    %5 = tpu.assume_multiple %4, 512 : i32
    %c0 = arith.constant 0 : index
    %6 = arith.index_cast %5 : i32 to index
    %7 = vector.load %arg2[%c0, %6] : memref<8x512xf32, #tpu.memory_space<vmem>>, vector<8x512xf32>
    %c0_2 = arith.constant 0 : index
    %8 = arith.index_cast %5 : i32 to index
    %9 = vector.load %arg3[%c0_2, %8] : memref<8x512xf32, #tpu.memory_space<vmem>>, vector<8x512xf32>
    %10 = arith.addf %3, %7 : vector<8x512xf32>
    %11 = arith.addf %3, %9 : vector<8x512xf32>
    %12 = arith.mulf %7, %9 : vector<8x512xf32>
    %13 = arith.addf %3, %12 : vector<8x512xf32>
    %c1_i32 = arith.constant 1 : i32
    %c0_3 = arith.constant 0 : index
    %c0_4 = arith.constant 0 : index
    %c0_5 = arith.constant 0 : index
    %14 = vector.load %arg4[%c0_3, %c0_4, %c0_5] : memref<1x8x512xf32, #tpu.memory_space<vmem>>, vector<1x8x512xf32>
    %15 = vector.shape_cast %10 : vector<8x512xf32> to vector<1x8x512xf32>
    %16 = arith.addf %14, %15 : vector<1x8x512xf32>
    %c0_6 = arith.constant 0 : index
    %c0_7 = arith.constant 0 : index
    %c0_8 = arith.constant 0 : index
    %17 = vector.load %arg4[%c0_6, %c0_7, %c0_8] : memref<1x8x512xf32, #tpu.memory_space<vmem>>, vector<1x8x512xf32>
    tpu.vector_store %arg4[%c0_6, %c0_7, %c0_8], %16 {strides = array<i32>} : memref<1x8x512xf32, #tpu.memory_space<vmem>>, vector<1x8x512xf32>,
    %c0_9 = arith.constant 0 : index
    %c0_10 = arith.constant 0 : index
    %c0_11 = arith.constant 0 : index
    %18 = vector.load %arg5[%c0_9, %c0_10, %c0_11] : memref<1x8x512xf32, #tpu.memory_space<vmem>>, vector<1x8x512xf32>
    %19 = vector.shape_cast %11 : vector<8x512xf32> to vector<1x8x512xf32>
    %20 = arith.addf %18, %19 : vector<1x8x512xf32>
    %c0_12 = arith.constant 0 : index
    %c0_13 = arith.constant 0 : index
    %c0_14 = arith.constant 0 : index
    %21 = vector.load %arg5[%c0_12, %c0_13, %c0_14] : memref<1x8x512xf32, #tpu.memory_space<vmem>>, vector<1x8x512xf32>
    tpu.vector_store %arg5[%c0_12, %c0_13, %c0_14], %20 {strides = array<i32>} : memref<1x8x512xf32, #tpu.memory_space<vmem>>, vector<1x8x512xf32>,
    %c0_15 = arith.constant 0 : index
    %c0_16 = arith.constant 0 : index
    %c0_17 = arith.constant 0 : index
    %22 = vector.load %arg6[%c0_15, %c0_16, %c0_17] : memref<1x8x512xf32, #tpu.memory_space<vmem>>, vector<1x8x512xf32>
    %23 = vector.shape_cast %13 : vector<8x512xf32> to vector<1x8x512xf32>
    %24 = arith.addf %22, %23 : vector<1x8x512xf32>
    %c0_18 = arith.constant 0 : index
    %c0_19 = arith.constant 0 : index
    %c0_20 = arith.constant 0 : index
    %25 = vector.load %arg6[%c0_18, %c0_19, %c0_20] : memref<1x8x512xf32, #tpu.memory_space<vmem>>, vector<1x8x512xf32>
    tpu.vector_store %arg6[%c0_18, %c0_19, %c0_20], %24 {strides = array<i32>} : memref<1x8x512xf32, #tpu.memory_space<vmem>>, vector<1x8x512xf32>,
    return
  }
  func.func @transform_0(%arg0: i32, %arg1: i32) -> (i32, i32) {
    %c1_i32 = arith.constant 1 : i32
    %0 = arith.muli %arg0, %c1_i32 : i32
    %1 = arith.addi %0, %arg1 : i32
    %c0_i32 = arith.constant 0 : i32
    %2 = arith.minsi %1, %c0_i32 : i32
    %c0_i32_0 = arith.constant 0 : i32
    %c0_i32_1 = arith.constant 0 : i32
    return %c0_i32_0, %2 : i32, i32
  }
  func.func @transform_1(%arg0: i32, %arg1: i32) -> (i32, i32) {
    %c1_i32 = arith.constant 1 : i32
    %0 = arith.muli %arg0, %c1_i32 : i32
    %1 = arith.addi %0, %arg1 : i32
    %c0_i32 = arith.constant 0 : i32
    %2 = arith.minsi %1, %c0_i32 : i32
    %c0_i32_0 = arith.constant 0 : i32
    %c0_i32_1 = arith.constant 0 : i32
    return %c0_i32_0, %2 : i32, i32
  }
  func.func @transform_2(%arg0: i32, %arg1: i32) -> (i32, i32, i32) {
    %c0_i32 = arith.constant 0 : i32
    %c0_i32_0 = arith.constant 0 : i32
    %c0_i32_1 = arith.constant 0 : i32
    return %arg0, %c0_i32, %c0_i32_0 : i32, i32, i32
  }
  func.func @transform_3(%arg0: i32, %arg1: i32) -> (i32, i32, i32) {
    %c0_i32 = arith.constant 0 : i32
    %c0_i32_0 = arith.constant 0 : i32
    %c0_i32_1 = arith.constant 0 : i32
    return %arg0, %c0_i32, %c0_i32_0 : i32, i32, i32
  }
  func.func @transform_4(%arg0: i32, %arg1: i32) -> (i32, i32, i32) {
    %c0_i32 = arith.constant 0 : i32
    %c0_i32_0 = arith.constant 0 : i32
    %c0_i32_1 = arith.constant 0 : i32
    return %arg0, %c0_i32, %c0_i32_0 : i32, i32, i32
  }
}

</mosaic_0001>

<llo_original>
// kernel: tpu_custom_call.1
$region0: #{tpu_custom_call.1}
  #allocation0 [shape = 'u32[]', space=smem, size = 0x4, offset = 0x4, fixed_abs, tag = 'smem constant byte address 0x4 - core index']
  #allocation1 [shape = 'u32[144,128]{1,0:T(1,128)}', space=vmem, size = 0x12000, scoped, tag = 'internal scratch']
  %s0 = inlined_call_operand.hbm [shape: f32[8,512], index: 0, kind: input, shape index: {}]
  %s1 = inlined_call_operand.hbm [shape: f32[8,512], index: 1, kind: input, shape index: {}]
  %s2 = inlined_call_operand.hbm [shape: f32[1,8,512], index: 2, kind: output, shape index: {0}]
  %s3 = inlined_call_operand.hbm [shape: f32[1,8,512], index: 3, kind: output, shape index: {1}]
  %s4 = inlined_call_operand.hbm [shape: f32[1,8,512], index: 4, kind: output, shape index: {2}]
  %5 = xla_tuple %s2, %s3, %s4
  %s6 = sld [smem:[#allocation0]]
  $region46: #{tpu_custom_call.1} parent=0
    _
  %s8 = ssub.s32 1, %s6
  %s9 = scalar_select 0, %s8, %s6
  $region1: #{tpu_custom_call.1} parent=0
    #allocation2 [shape = 'u8[16384]{0}', space=vmem, size = 0x4000, scoped, tag = 'input window, operand 0, single buffered']
    #allocation3 [shape = 's32[1]{0}', space=sflag, size = 0x4, scoped, tag = 'scoped memory for tpu_custom_call.1']
    #allocation4 [shape = 's32[1]{0}', space=sflag, size = 0x4, scoped, tag = 'scoped memory for tpu_custom_call.1']
    #allocation5 [shape = 'u8[16384]{0}', space=vmem, size = 0x4000, scoped, tag = 'input window, operand 1, single buffered']
    #allocation6 [shape = 's32[1]{0}', space=sflag, size = 0x4, scoped, tag = 'scoped memory for tpu_custom_call.1']
    #allocation7 [shape = 'u8[16384]{0}', space=vmem, size = 0x4000, scoped, tag = 'output window, operand 0, single buffered']
    #allocation8 [shape = 'u8[16384]{0}', space=vmem, size = 0x4000, scoped, tag = 'output window, operand 1, single buffered']
    #allocation9 [shape = 's32[1]{0}', space=sflag, size = 0x4, scoped, tag = 'scoped memory for tpu_custom_call.1']
    #allocation10 [shape = 'u8[16384]{0}', space=vmem, size = 0x4000, scoped, tag = 'output window, operand 2, single buffered']
    %10 = vsyncpa [#allocation3], 0
    %11 = vsyncpa [#allocation6], 0
    %12 = vsyncpa [#allocation4], 0
    %13 = vsyncpa [#allocation9], 0
    // Predicated region
    $region2: #{tpu_custom_call.1} parent=1 // pred_check
      _
    $region3: #{tpu_custom_call.1} parent=1 // pred_check_branch
      %15 = sbr.rel (0) target = $region5
    $region4: #{tpu_custom_call.1} parent=1 // pred_region
      %s16 = sadd.s32 0, 0
      %p17 = scmp.lt.s32.totalorder %s16, 0
      %s18 = scalar_select %p17, %s16, 0
      %s19 = smul.u32 4, %s18
      %s21 = ssub.s32 512, 512
      %22 = vsyncadd [#allocation3], %s21
      %s23 = smul.addr %s19, 128
      %s24 = scalar_lea.hbm %s0, %s23
      %s26 = sshll.u32 [#allocation2], 4
      %s27 = int_to_ptr.vmem [resolvable:$true] %s26
      %29 = dma.hbm_to_vmem [thread:$0]  %s24, 512, %s27, [#allocation3]
    $region5: #{tpu_custom_call.1} parent=1 // pred_fallthru
      _
    // Predicated region
    $region6: #{tpu_custom_call.1} parent=1 // pred_check
      _
    $region7: #{tpu_custom_call.1} parent=1 // pred_check_branch
      %31 = sbr.rel (0) target = $region9
    $region8: #{tpu_custom_call.1} parent=1 // pred_region
      %s32 = sadd.s32 0, 0
      %p33 = scmp.lt.s32.totalorder %s32, 0
      %s34 = scalar_select %p33, %s32, 0
      %s35 = smul.u32 4, %s34
      %s37 = ssub.s32 512, 512
      %38 = vsyncadd [#allocation6], %s37
      %s39 = smul.addr %s35, 128
      %s40 = scalar_lea.hbm %s1, %s39
      %s42 = sshll.u32 [#allocation5], 4
      %s43 = int_to_ptr.vmem [resolvable:$true] %s42
      %45 = dma.hbm_to_vmem [thread:$0]  %s40, 512, %s43, [#allocation6]
    $region9: #{tpu_custom_call.1} parent=1 // pred_fallthru
      _
    // Predicated region
    $region10: #{tpu_custom_call.1} parent=1 // pred_check
      _
    $region11: #{tpu_custom_call.1} parent=1 // pred_check_branch
      %47 = sbr.rel (0) target = $region13
    $region12: #{tpu_custom_call.1} parent=1 // pred_region
      %48 = dma.done [#allocation3], 512
    $region13: #{tpu_custom_call.1} parent=1 // pred_fallthru
      _
    // Predicated region
    $region14: #{tpu_custom_call.1} parent=1 // pred_check
      _
    $region15: #{tpu_custom_call.1} parent=1 // pred_check_branch
      %50 = sbr.rel (0) target = $region17
    $region16: #{tpu_custom_call.1} parent=1 // pred_region
      %51 = dma.done [#allocation6], 512
    $region17: #{tpu_custom_call.1} parent=1 // pred_fallthru
      _
    %s52 = sadd.s32 0, 0
    %p53 = scmp.lt.s32.totalorder %s52, 0
    %s54 = scalar_select %p53, %s52, 0
    %s55 = smul.u32 4, %s54
    %s56 = sadd.s32 0, 0
    %p57 = scmp.lt.s32.totalorder %s56, 0
    %s58 = scalar_select %p57, %s56, 0
    %s59 = smul.u32 4, %s58
    %p60 = scmp.eq.s32.totalorder 0, 0
    // Predicated region
    $region18: #{tpu_custom_call.1} parent=1 // pred_check
      %p61 = pneg %p60
    $region19: #{tpu_custom_call.1} parent=1 // pred_check_branch
      %63 = sbr.rel (%p61) target = $region21
    $region20: #{tpu_custom_call.1} parent=1 // pred_region
      %64 = vst [vmem:[#allocation7] sm:$0xff] 0.0
      %65 = vst [vmem:[#allocation7 + $0x8] sm:$0xff] 0.0
      %66 = vst [vmem:[#allocation7 + $0x10] sm:$0xff] 0.0
      %67 = vst [vmem:[#allocation7 + $0x18] sm:$0xff] 0.0
      %68 = vst [vmem:[#allocation8] sm:$0xff] 0.0
      %69 = vst [vmem:[#allocation8 + $0x8] sm:$0xff] 0.0
      %70 = vst [vmem:[#allocation8 + $0x10] sm:$0xff] 0.0
      %71 = vst [vmem:[#allocation8 + $0x18] sm:$0xff] 0.0
      %72 = vst [vmem:[#allocation10] sm:$0xff] 0.0
      %73 = vst [vmem:[#allocation10 + $0x8] sm:$0xff] 0.0
      %74 = vst [vmem:[#allocation10 + $0x10] sm:$0xff] 0.0
      %75 = vst [vmem:[#allocation10 + $0x18] sm:$0xff] 0.0
    $region21: #{tpu_custom_call.1} parent=1 // pred_fallthru
      _
    %v76 = vld [vmem:[#allocation2] sm:$0xff]
    %v77 = vld [vmem:[#allocation2 + $0x8] sm:$0xff]
    %v78 = vld [vmem:[#allocation2 + $0x10] sm:$0xff]
    %v79 = vld [vmem:[#allocation2 + $0x18] sm:$0xff]
    %v80 = vld [vmem:[#allocation5] sm:$0xff]
    %v81 = vld [vmem:[#allocation5 + $0x8] sm:$0xff]
    %v82 = vld [vmem:[#allocation5 + $0x10] sm:$0xff]
    %v83 = vld [vmem:[#allocation5 + $0x18] sm:$0xff]
    %v84 = vadd.f32 %v76, 0.0
    %v85 = vadd.f32 %v77, 0.0
    %v86 = vadd.f32 %v78, 0.0
    %v87 = vadd.f32 %v79, 0.0
    %v88 = vadd.f32 %v80, 0.0
    %v89 = vadd.f32 %v81, 0.0
    %v90 = vadd.f32 %v82, 0.0
    %v91 = vadd.f32 %v83, 0.0
    %v92 = vmul.f32 %v76, %v80
    %v93 = vmul.f32 %v77, %v81
    %v94 = vmul.f32 %v78, %v82
    %v95 = vmul.f32 %v79, %v83
    %v96 = vadd.f32 %v92, 0.0
    %v97 = vadd.f32 %v93, 0.0
    %v98 = vadd.f32 %v94, 0.0
    %v99 = vadd.f32 %v95, 0.0
    %v100 = vld [vmem:[#allocation7] sm:$0xff]
    %v101 = vld [vmem:[#allocation7 + $0x8] sm:$0xff]
    %v102 = vld [vmem:[#allocation7 + $0x10] sm:$0xff]
    %v103 = vld [vmem:[#allocation7 + $0x18] sm:$0xff]
    %v104 = vadd.f32 %v100, %v84
    %v105 = vadd.f32 %v101, %v85
    %v106 = vadd.f32 %v102, %v86
    %v107 = vadd.f32 %v103, %v87
    %108 = vst [vmem:[#allocation7] sm:$0xff] %v104
    %109 = vst [vmem:[#allocation7 + $0x8] sm:$0xff] %v105
    %110 = vst [vmem:[#allocation7 + $0x10] sm:$0xff] %v106
    %111 = vst [vmem:[#allocation7 + $0x18] sm:$0xff] %v107
    %v112 = vld [vmem:[#allocation8] sm:$0xff]
    %v113 = vld [vmem:[#allocation8 + $0x8] sm:$0xff]
    %v114 = vld [vmem:[#allocation8 + $0x10] sm:$0xff]
    %v115 = vld [vmem:[#allocation8 + $0x18] sm:$0xff]
    %v116 = vadd.f32 %v112, %v88
    %v117 = vadd.f32 %v113, %v89
    %v118 = vadd.f32 %v114, %v90
    %v119 = vadd.f32 %v115, %v91
    %120 = vst [vmem:[#allocation8] sm:$0xff] %v116
    %121 = vst [vmem:[#allocation8 + $0x8] sm:$0xff] %v117
    %122 = vst [vmem:[#allocation8 + $0x10] sm:$0xff] %v118
    %123 = vst [vmem:[#allocation8 + $0x18] sm:$0xff] %v119
    %v124 = vld [vmem:[#allocation10] sm:$0xff]
    %v125 = vld [vmem:[#allocation10 + $0x8] sm:$0xff]
    %v126 = vld [vmem:[#allocation10 + $0x10] sm:$0xff]
    %v127 = vld [vmem:[#allocation10 + $0x18] sm:$0xff]
    %v128 = vadd.f32 %v124, %v96
    %v129 = vadd.f32 %v125, %v97
    %v130 = vadd.f32 %v126, %v98
    %v131 = vadd.f32 %v127, %v99
    %132 = vst [vmem:[#allocation10] sm:$0xff] %v128
    %133 = vst [vmem:[#allocation10 + $0x8] sm:$0xff] %v129
    %134 = vst [vmem:[#allocation10 + $0x10] sm:$0xff] %v130
    %135 = vst [vmem:[#allocation10 + $0x18] sm:$0xff] %v131
    // Predicated region
    $region22: #{tpu_custom_call.1} parent=1 // pred_check
      _
    $region23: #{tpu_custom_call.1} parent=1 // pred_check_branch
      %137 = sbr.rel (0) target = $region25
    $region24: #{tpu_custom_call.1} parent=1 // pred_region
      %s139 = ssub.s32 512, 512
      %140 = vsyncadd [#allocation4], %s139
      %s142 = sshll.u32 [#allocation7], 4
      %s143 = int_to_ptr.vmem [resolvable:$true] %s142
      %145 = dma.vmem_to_hbm [thread:$0]  %s143, 512, %s2, [#allocation4]
    $region25: #{tpu_custom_call.1} parent=1 // pred_fallthru
      _
    // Predicated region
    $region26: #{tpu_custom_call.1} parent=1 // pred_check
      _
    $region27: #{tpu_custom_call.1} parent=1 // pred_check_branch
      %147 = sbr.rel (0) target = $region29
    $region28: #{tpu_custom_call.1} parent=1 // pred_region
      %s149 = ssub.s32 512, 512
      %150 = vsyncadd [#allocation9], %s149
      %s152 = sshll.u32 [#allocation8], 4
      %s153 = int_to_ptr.vmem [resolvable:$true] %s152
      %155 = dma.vmem_to_hbm [thread:$0]  %s153, 512, %s3, [#allocation9]
    $region29: #{tpu_custom_call.1} parent=1 // pred_fallthru
      _
    // Predicated region
    $region30: #{tpu_custom_call.1} parent=1 // pred_check
      _
    $region31: #{tpu_custom_call.1} parent=1 // pred_check_branch
      %157 = sbr.rel (0) target = $region33
    $region32: #{tpu_custom_call.1} parent=1 // pred_region
      %s159 = ssub.s32 512, 512
      %160 = vsyncadd [#allocation9], %s159
      %s162 = sshll.u32 [#allocation10], 4
      %s163 = int_to_ptr.vmem [resolvable:$true] %s162
      %165 = dma.vmem_to_hbm [thread:$0]  %s163, 512, %s4, [#allocation9]
    $region33: #{tpu_custom_call.1} parent=1 // pred_fallthru
      _
    // Predicated region
    $region34: #{tpu_custom_call.1} parent=1 // pred_check
      _
    $region35: #{tpu_custom_call.1} parent=1 // pred_check_branch
      %167 = sbr.rel (0) target = $region37
    $region36: #{tpu_custom_call.1} parent=1 // pred_region
      %168 = dma.done [#allocation4], 512
    $region37: #{tpu_custom_call.1} parent=1 // pred_fallthru
      _
    // Predicated region
    $region38: #{tpu_custom_call.1} parent=1 // pred_check
      _
    $region39: #{tpu_custom_call.1} parent=1 // pred_check_branch
      %170 = sbr.rel (0) target = $region41
    $region40: #{tpu_custom_call.1} parent=1 // pred_region
      %171 = dma.done [#allocation9], 512
    $region41: #{tpu_custom_call.1} parent=1 // pred_fallthru
      _
    // Predicated region
    $region42: #{tpu_custom_call.1} parent=1 // pred_check
      _
    $region43: #{tpu_custom_call.1} parent=1 // pred_check_branch
      %173 = sbr.rel (0) target = $region45
    $region44: #{tpu_custom_call.1} parent=1 // pred_region
      %174 = dma.done [#allocation9], 512
    $region45: #{tpu_custom_call.1} parent=1 // pred_fallthru
      _
    %175 = vsyncpa [#allocation3], 1
    %176 = vsyncpa [#allocation6], 1
    %177 = vsyncpa [#allocation4], 1
    %178 = vsyncpa [#allocation9], 1

</llo_original>
